<compile_context>
chip_gen: v6e
topology: v6e:2x2x1
jax: 0.10.0
libtpu: 0.0.40
codegen_flags: <defaults>
</compile_context>

<pallas_src>
import jax
import jax.numpy as jnp
from jax import lax
from jax.experimental import pallas as pl
from jax.experimental.pallas import tpu as pltpu


def _round_up(x: int, m: int) -> int:
    return ((x + m - 1) // m) * m


def _detect_num_tensorcores() -> int:
    """Best-effort TensorCores-per-chip (2 on v7x, 1 on v5e/v6e). Defaults to 1."""
    # Probe TpuInfo for a per-chip core count under a few plausible names.
    try:
        info = pltpu.get_tpu_info()
        for name in ("tensorcores_per_chip", "num_tensorcores", "tensorcore_count",
                     "cores_per_chip", "num_cores", "core_count"):
            v = getattr(info, name, None)
            if isinstance(v, int) and 1 <= v <= 8:
                return min(int(v), 2)
    except Exception:
        pass
    # Fall back to the tensorcore mesh extent, if constructible.
    try:
        mesh = pltpu.create_tensorcore_mesh("core")
        shape = getattr(mesh, "shape", None)
        if shape is not None:
            try:
                vals = list(shape.values())  # mapping-like shape
            except AttributeError:
                vals = list(shape)
            n = 1
            for v in vals:
                n *= int(v)
            if 1 <= n <= 8:
                return min(n, 2)
    except Exception:
        pass
    return 1


def _make_kernel(B: int, C: int, tile_b: int, tiles_per_core: int,
                 coverage_ragged: bool):
    inv_n = 1.0 / float(B * C)
    inv_c = 1.0 / float(C)

    def fold(v):
        # Fold a (tile_b, C) tile into the (8, C) vreg-shaped accumulator with
        # plain VPU adds (sum over a non-minor axis -> no XLU traffic).
        if tile_b > 8:
            return jnp.sum(v.reshape(tile_b // 8, 8, C), axis=0)
        return v

    def kernel(out_ref, tgt_ref, w_ref, loss_ref, acc_ref):
        c = pl.program_id(0)
        i = pl.program_id(1)

        # Zero the per-core accumulator at the start of each core's row sweep.
        @pl.when(i == 0)
        def _init():
            acc_ref[...] = jnp.zeros_like(acc_ref)

        x = out_ref[...].astype(jnp.float32)
        y = tgt_ref[...].astype(jnp.float32)

        # outputs[outputs > 13] = 13 ; outputs[outputs < -13] = -13
        x = jnp.clip(x, -13.0, 13.0)

        # Numerically stable BCE-with-logits (matches torch.nn.BCEWithLogitsLoss):
        #   l = max(x, 0) - x*y + log1p(exp(-|x|))
        bce = jnp.maximum(x, 0.0) - x * y + jnp.log1p(jnp.exp(-jnp.abs(x)))

        if coverage_ragged:
            # Only the boundary (or past-the-end) tiles need masking; keep the
            # mask off the hot path via two cold/hot pl.when accumulate paths.
            row0 = (c * tiles_per_core + i) * tile_b
            is_edge = row0 + tile_b > B

            @pl.when(jnp.logical_not(is_edge))
            def _acc_full():
                acc_ref[...] += fold(bce)

            @pl.when(is_edge)
            def _acc_edge():
                # (tile_b, 1) iota; broadcasting handles C.  Must be a
                # where-select so garbage/NaN lanes beyond B become exactly 0.
                rows = row0 + lax.broadcasted_iota(jnp.int32, (tile_b, 1), 0)
                acc_ref[...] += fold(jnp.where(rows < B, bce, 0.0))
        else:
            acc_ref[...] += fold(bce)

        # One XLU reduce + the weights term, only on the last step of the sweep.
        @pl.when(i == pl.num_programs(1) - 1)
        def _finalize():
            total = jnp.sum(acc_ref[...])
            w_mean = jnp.sum(w_ref[...].astype(jnp.float32)) * jnp.float32(inv_c)
            val = total * jnp.float32(inv_n) * w_mean
            loss_ref[...] = jnp.full(loss_ref.shape, val, dtype=jnp.float32)

    return kernel


def weighted_multilabel2(outputs, targets, weights, *, tile_b=None, num_cores=None):
    """outputs, targets: (B, C); weights: (C,). Returns scalar f32 loss."""
    B, C = outputs.shape
    assert targets.shape == (B, C)
    w2d = weights.reshape(1, C)

    o_item = jnp.dtype(outputs.dtype).itemsize
    t_item = jnp.dtype(targets.dtype).itemsize

    detected_cores = _detect_num_tensorcores()
    if num_cores is None:
        num_cores = detected_cores
    num_cores = max(1, int(num_cores))

    # --- Tile sizing: ~4 MiB per stream buffer (rows multiple of 8, no row cap).
    if tile_b is None:
        target_buf_bytes = 4 * 1024 * 1024
        rows = (target_buf_bytes // max(C * max(o_item, t_item), 1)) // 8 * 8
        rows = max(8, rows)
        tile_b = min(_round_up(B, 8), rows)
    tile_b = max(8, _round_up(int(tile_b), 8))

    # --- Guarantee pipeline depth: each core should sweep >= 3 blocks (when B
    #     permits) so DMA prefetch has a next block to hide behind.
    while tile_b > 8 and pl.cdiv(B, tile_b) < 3 * num_cores:
        tile_b = max(8, _round_up(tile_b // 2, 8))

    num_tiles = pl.cdiv(B, tile_b)
    if num_tiles < num_cores:
        num_cores = 1
    tiles_per_core = pl.cdiv(num_tiles, num_cores)
    # True when the grid's nominal coverage (cores * tiles * tile_b) != B:
    # the last in-range tile is partial and/or some nominal tiles lie past B.
    coverage_ragged = (num_cores * tiles_per_core * tile_b) != B

    def in_idx(c, i):
        # Clamp so no DMA ever starts beyond the array; past-the-end nominal
        # tiles re-read the last valid block and are zeroed by the row mask.
        return (jnp.minimum(c * tiles_per_core + i, num_tiles - 1), 0)

    grid = (num_cores, tiles_per_core)
    in_specs = [
        pl.BlockSpec((tile_b, C), in_idx),
        pl.BlockSpec((tile_b, C), in_idx),
        pl.BlockSpec((1, C), lambda c, i: (0, 0)),  # weights: resident
    ]
    out_specs = pl.BlockSpec((1, 1, 1), lambda c, i: (c, 0, 0))

    # --- VMEM budget: 2 inputs x 2 buffers of (tile_b, C) + residents + slack.
    stream_bytes = 2 * tile_b * C * (o_item + t_item)
    resident_bytes = 2 * C * 4 + 8 * C * 4 + (1 << 20)
    vmem_need = stream_bytes + resident_bytes
    vmem_limit = int(min(max(2 * vmem_need, 16 * 2**20), 48 * 2**20))

    cost = pl.CostEstimate(
        flops=int(6 * B * C),
        transcendentals=int(2 * B * C),
        bytes_accessed=int(B * C * (o_item + t_item)
                           + C * jnp.dtype(w2d.dtype).itemsize + num_cores * 4),
    )

    kernel = _make_kernel(B, C, tile_b, tiles_per_core, coverage_ragged)

    # --- Dimension semantics: real 2-TC split (CORE_PARALLEL) only when the
    #     hardware actually has 2 TensorCores; otherwise plain "parallel".
    sem_candidates = []
    if (num_cores >= 2 and detected_cores >= 2
            and hasattr(pltpu, "CORE_PARALLEL") and hasattr(pltpu, "ARBITRARY")):
        sem_candidates.append((pltpu.CORE_PARALLEL, pltpu.ARBITRARY))
    sem_candidates.append(("parallel", "arbitrary"))

    last_err = None
    for sems in sem_candidates:
        try:
            partials = pl.pallas_call(
                kernel,
                out_shape=jax.ShapeDtypeStruct((num_cores, 1, 1), jnp.float32),
                grid_spec=pltpu.PrefetchScalarGridSpec(
                    num_scalar_prefetch=0,
                    grid=grid,
                    in_specs=in_specs,
                    out_specs=out_specs,
                    scratch_shapes=[pltpu.VMEM((8, C), jnp.float32)],
                ),
                compiler_params=pltpu.CompilerParams(
                    dimension_semantics=sems,
                    vmem_limit_bytes=vmem_limit,
                ),
                cost_estimate=cost,
            )(outputs, targets, w2d)
            return jnp.sum(partials)
        except Exception as e:  # CORE_PARALLEL unsupported here -> fall back.
            last_err = e
    raise last_err


def _reference(outputs, targets, weights):
    x = jnp.clip(outputs.astype(jnp.float32), -13.0, 13.0)
    y = targets.astype(jnp.float32)
    bce = jnp.maximum(x, 0.0) - x * y + jnp.log1p(jnp.exp(-jnp.abs(x)))
    return jnp.mean(bce) * jnp.mean(weights.astype(jnp.float32))


if __name__ == "__main__":
    key = jax.random.PRNGKey(0)
    k1, k2, k3, k4, k5, k6, k7, k8 = jax.random.split(key, 8)

    # Case 1: lane-aligned f32, single tile.
    B1, C1 = 8, 128
    o1 = jax.random.normal(k1, (B1, C1), dtype=jnp.float32) * 5.0
    t1 = (jax.random.uniform(k2, (B1, C1)) > 0.5).astype(jnp.float32)
    w1 = jax.random.uniform(k3, (C1,), dtype=jnp.float32) + 0.5
    r1 = jax.block_until_ready(weighted_multilabel2(o1, t1, w1))
    ref1 = jax.block_until_ready(_reference(o1, t1, w1))
    assert jnp.allclose(r1, ref1, rtol=1e-5, atol=1e-6), (r1, ref1)

    # Case 2: ragged B/C, bf16 inputs, multi-tile grid + boundary-tile masking
    # (no wrapper-side padding).
    B2, C2 = 50, 96
    o2 = (jax.random.normal(k4, (B2, C2), dtype=jnp.float32) * 5.0).astype(jnp.bfloat16)
    t2 = (jax.random.uniform(k5, (B2, C2)) > 0.5).astype(jnp.bfloat16)
    w2 = jax.random.uniform(k6, (C2,), dtype=jnp.float32) + 0.5
    r2 = jax.block_until_ready(weighted_multilabel2(o2, t2, w2, tile_b=16))
    ref2 = jax.block_until_ready(_reference(o2, t2, w2))
    assert jnp.allclose(r2, ref2, rtol=1e-4, atol=1e-5), (r2, ref2)

    # Case 3: forced 2-core split with an odd tile count -> exercises the
    # clamped past-the-end nominal tile + masked edge path.
    B3, C3 = 40, 128
    o3 = jax.random.normal(k7, (B3, C3), dtype=jnp.float32) * 5.0
    t3 = (jax.random.uniform(k8, (B3, C3)) > 0.5).astype(jnp.float32)
    w3 = jax.random.uniform(k3, (C3,), dtype=jnp.float32) + 0.5
    r3 = jax.block_until_ready(weighted_multilabel2(o3, t3, w3, tile_b=8, num_cores=2))
    ref3 = jax.block_until_ready(_reference(o3, t3, w3))
    assert jnp.allclose(r3, ref3, rtol=1e-5, atol=1e-6), (r3, ref3)

    print("KERNEL_OK")
</pallas_src>

<mosaic_0001>
module attributes {stable_mosaic.version = 11 : i64} {
  func.func @kernel(%arg0: i32, %arg1: i32, %arg2: memref<8x128xf32, #tpu.memory_space<vmem>>, %arg3: memref<8x128xf32, #tpu.memory_space<vmem>>, %arg4: memref<1x128xf32, #tpu.memory_space<vmem>>, %arg5: memref<1x1x1xf32, #tpu.memory_space<vmem>>, %arg6: memref<8x128xf32, #tpu.memory_space<vmem>>) attributes {dimension_semantics = [#tpu.dimension_semantics<parallel>, #tpu.dimension_semantics<arbitrary>], iteration_bounds = array<i64: 1, 1>, scalar_prefetch = 0 : i64, scratch_operands = 1 : i64, tpu.core_type = #tpu.core_type<tc>, window_params = [{transform_indices = @transform_0, window_bounds = array<i64: 8, 128>}, {transform_indices = @transform_1, window_bounds = array<i64: 8, 128>}, {pipeline_mode = #tpu.pipeline_mode<synchronous>, transform_indices = @transform_2, window_bounds = array<i64: 1, 128>}, {transform_indices = @transform_3, window_bounds = array<i64: 1, 1, 1>}]} {
    %c0_i32 = arith.constant 0 : i32
    %0 = arith.cmpi eq, %arg1, %c0_i32 : i32
    %1 = arith.extui %0 : i1 to i32
    %c0_i32_0 = arith.constant 0 : i32
    %2 = arith.cmpi ne, %1, %c0_i32_0 : i32
    scf.if %2 {
      %cst_13 = arith.constant 0.000000e+00 : f32
      %25 = vector.broadcast %cst_13 : f32 to vector<8x128xf32>
      %c0_14 = arith.constant 0 : index
      %c0_15 = arith.constant 0 : index
      %26 = vector.load %arg6[%c0_14, %c0_15] : memref<8x128xf32, #tpu.memory_space<vmem>>, vector<8x128xf32>
      tpu.vector_store %arg6[%c0_14, %c0_15], %25 {strides = array<i32>} : memref<8x128xf32, #tpu.memory_space<vmem>>, vector<8x128xf32>,
    } else {
    }
    %c0 = arith.constant 0 : index
    %c0_1 = arith.constant 0 : index
    %3 = vector.load %arg2[%c0, %c0_1] : memref<8x128xf32, #tpu.memory_space<vmem>>, vector<8x128xf32>
    %c0_2 = arith.constant 0 : index
    %c0_3 = arith.constant 0 : index
    %4 = vector.load %arg3[%c0_2, %c0_3] : memref<8x128xf32, #tpu.memory_space<vmem>>, vector<8x128xf32>
    %cst = arith.constant -1.300000e+01 : f32
    %cst_4 = arith.constant 1.300000e+01 : f32
    %5 = vector.broadcast %cst : f32 to vector<8x128xf32>
    %6 = arith.maximumf %5, %3 : vector<8x128xf32>
    %7 = vector.broadcast %cst_4 : f32 to vector<8x128xf32>
    %8 = arith.minimumf %7, %6 : vector<8x128xf32>
    %cst_5 = arith.constant 0.000000e+00 : f32
    %9 = vector.broadcast %cst_5 : f32 to vector<8x128xf32>
    %10 = arith.maximumf %8, %9 : vector<8x128xf32>
    %11 = arith.mulf %8, %4 : vector<8x128xf32>
    %12 = arith.subf %10, %11 : vector<8x128xf32>
    %13 = math.absf %8 : vector<8x128xf32>
    %cst_6 = arith.constant 0.000000e+00 : f32
    %14 = vector.broadcast %cst_6 : f32 to vector<8x128xf32>
    %15 = arith.subf %14, %13 : vector<8x128xf32>
    %16 = math.exp %15 : vector<8x128xf32>
    %17 = math.log1p %16 : vector<8x128xf32>
    %18 = arith.addf %12, %17 : vector<8x128xf32>
    %c0_7 = arith.constant 0 : index
    %c0_8 = arith.constant 0 : index
    %19 = vector.load %arg6[%c0_7, %c0_8] : memref<8x128xf32, #tpu.memory_space<vmem>>, vector<8x128xf32>
    %20 = arith.addf %19, %18 : vector<8x128xf32>
    %c0_9 = arith.constant 0 : index
    %c0_10 = arith.constant 0 : index
    %21 = vector.load %arg6[%c0_9, %c0_10] : memref<8x128xf32, #tpu.memory_space<vmem>>, vector<8x128xf32>
    tpu.vector_store %arg6[%c0_9, %c0_10], %20 {strides = array<i32>} : memref<8x128xf32, #tpu.memory_space<vmem>>, vector<8x128xf32>,
    %c0_i32_11 = arith.constant 0 : i32
    %22 = arith.cmpi eq, %arg1, %c0_i32_11 : i32
    %23 = arith.extui %22 : i1 to i32
    %c0_i32_12 = arith.constant 0 : i32
    %24 = arith.cmpi ne, %23, %c0_i32_12 : i32
    scf.if %24 {
      %c0_13 = arith.constant 0 : index
      %c0_14 = arith.constant 0 : index
      %25 = vector.load %arg6[%c0_13, %c0_14] : memref<8x128xf32, #tpu.memory_space<vmem>>, vector<8x128xf32>
      %26 = vector.shape_cast %25 : vector<8x128xf32> to vector<1x8x128xf32>
      %cst_15 = arith.constant dense<0.000000e+00> : vector<1xf32>
      %27 = vector.multi_reduction <add>, %26, %cst_15 [1, 2] : vector<1x8x128xf32> to vector<1xf32>
      %28 = vector.shape_cast %27 : vector<1xf32> to vector<1x1x1xf32>
      %29 = vector.extract %28[0, 0, 0] : f32 from vector<1x1x1xf32>
      %c0_16 = arith.constant 0 : index
      %c0_17 = arith.constant 0 : index
      %30 = vector.load %arg4[%c0_16, %c0_17] : memref<1x128xf32, #tpu.memory_space<vmem>>, vector<1x128xf32>
      %31 = vector.shape_cast %30 : vector<1x128xf32> to vector<1x1x128xf32>
      %cst_18 = arith.constant dense<0.000000e+00> : vector<1xf32>
      %32 = vector.multi_reduction <add>, %31, %cst_18 [1, 2] : vector<1x1x128xf32> to vector<1xf32>
      %33 = vector.shape_cast %32 : vector<1xf32> to vector<1x1x1xf32>
      %34 = vector.extract %33[0, 0, 0] : f32 from vector<1x1x1xf32>
      %cst_19 = arith.constant 7.812500e-03 : f32
      %35 = arith.mulf %34, %cst_19 : f32
      %cst_20 = arith.constant 9.765625E-4 : f32
      %36 = arith.mulf %29, %cst_20 : f32
      %37 = arith.mulf %36, %35 : f32
      %38 = vector.broadcast %37 : f32 to vector<1x1x1xf32>
      %c0_21 = arith.constant 0 : index
      %c0_22 = arith.constant 0 : index
      %c0_23 = arith.constant 0 : index
      %39 = vector.load %arg5[%c0_21, %c0_22, %c0_23] : memref<1x1x1xf32, #tpu.memory_space<vmem>>, vector<1x1x1xf32>
      tpu.vector_store %arg5[%c0_21, %c0_22, %c0_23], %38 {strides = array<i32>} : memref<1x1x1xf32, #tpu.memory_space<vmem>>, vector<1x1x1xf32>,
    } else {
    }
    return
  }
  func.func @transform_0(%arg0: i32, %arg1: i32) -> (i32, i32) {
    %c1_i32 = arith.constant 1 : i32
    %0 = arith.muli %arg0, %c1_i32 : i32
    %1 = arith.addi %0, %arg1 : i32
    %c0_i32 = arith.constant 0 : i32
    %2 = arith.minsi %1, %c0_i32 : i32
    %c0_i32_0 = arith.constant 0 : i32
    %c0_i32_1 = arith.constant 0 : i32
    return %2, %c0_i32_0 : i32, i32
  }
  func.func @transform_1(%arg0: i32, %arg1: i32) -> (i32, i32) {
    %c1_i32 = arith.constant 1 : i32
    %0 = arith.muli %arg0, %c1_i32 : i32
    %1 = arith.addi %0, %arg1 : i32
    %c0_i32 = arith.constant 0 : i32
    %2 = arith.minsi %1, %c0_i32 : i32
    %c0_i32_0 = arith.constant 0 : i32
    %c0_i32_1 = arith.constant 0 : i32
    return %2, %c0_i32_0 : i32, i32
  }
  func.func @transform_2(%arg0: i32, %arg1: i32) -> (i32, i32) {
    %c0_i32 = arith.constant 0 : i32
    %c0_i32_0 = arith.constant 0 : i32
    %c0_i32_1 = arith.constant 0 : i32
    return %c0_i32, %c0_i32_0 : i32, i32
  }
  func.func @transform_3(%arg0: i32, %arg1: i32) -> (i32, i32, i32) {
    %c0_i32 = arith.constant 0 : i32
    %c0_i32_0 = arith.constant 0 : i32
    %c0_i32_1 = arith.constant 0 : i32
    return %arg0, %c0_i32, %c0_i32_0 : i32, i32, i32
  }
}

</mosaic_0001>

<llo_original>
// kernel: tpu_custom_call.1
$region0: #{tpu_custom_call.1}
  #allocation0 [shape = 'u32[]', space=smem, size = 0x4, offset = 0x4, fixed_abs, tag = 'smem constant byte address 0x4 - core index']
  #allocation1 [shape = 'u32[144,128]{1,0:T(1,128)}', space=vmem, size = 0x12000, scoped, tag = 'internal scratch']
  #allocation2 [shape = 'f32[8,128]{1,0:T(8,128)}', space=vmem, size = 0x1000, scoped, tag = 'scratch operand']
  %s0 = inlined_call_operand.hbm [shape: f32[8,128], index: 0, kind: input, shape index: {}]
  %s1 = inlined_call_operand.hbm [shape: f32[8,128], index: 1, kind: input, shape index: {}]
  %s2 = inlined_call_operand.vmem [shape: f32[1,128], index: 2, kind: input, shape index: {}]
  %s3 = inlined_call_operand.hbm [shape: f32[1,1,1], index: 3, kind: output, shape index: {}]
  %s4 = sld [smem:[#allocation0]]
  $region38: #{tpu_custom_call.1} parent=0
    _
  %s6 = ssub.s32 1, %s4
  %s7 = scalar_select 0, %s6, %s4
  $region1: #{tpu_custom_call.1} parent=0
    #allocation3 [shape = 'u8[4096]{0}', space=vmem, size = 0x1000, scoped, tag = 'input window, operand 0, single buffered']
    #allocation4 [shape = 's32[1]{0}', space=sflag, size = 0x4, scoped, tag = 'scoped memory for tpu_custom_call.1']
    #allocation5 [shape = 's32[1]{0}', space=sflag, size = 0x4, scoped, tag = 'scoped memory for tpu_custom_call.1']
    #allocation6 [shape = 'u8[4096]{0}', space=vmem, size = 0x1000, scoped, tag = 'input window, operand 1, single buffered']
    #allocation7 [shape = 's32[1]{0}', space=sflag, size = 0x4, scoped, tag = 'scoped memory for tpu_custom_call.1']
    #allocation8 [shape = 'u8[512]{0}', space=vmem, size = 0x400, scoped, tag = 'output window, operand 0, single buffered']
    %8 = vsyncpa [#allocation4], 0
    %9 = vsyncpa [#allocation7], 0
    %10 = vsyncpa [#allocation5], 0
    // Predicated region
    $region2: #{tpu_custom_call.1} parent=1 // pred_check
      _
    $region3: #{tpu_custom_call.1} parent=1 // pred_check_branch
      %12 = sbr.rel (0) target = $region5
    $region4: #{tpu_custom_call.1} parent=1 // pred_region
      %s13 = sadd.s32 0, 0
      %p14 = scmp.lt.s32.totalorder %s13, 0
      %s15 = scalar_select %p14, %s13, 0
      %s17 = ssub.s32 128, 128
      %18 = vsyncadd [#allocation4], %s17
      %s19 = smul.addr %s15, 128
      %s20 = scalar_lea.hbm %s0, %s19
      %s22 = sshll.u32 [#allocation3], 4
      %s23 = int_to_ptr.vmem [resolvable:$true] %s22
      %25 = dma.hbm_to_vmem [thread:$0]  %s20, 128, %s23, [#allocation4]
    $region5: #{tpu_custom_call.1} parent=1 // pred_fallthru
      _
    // Predicated region
    $region6: #{tpu_custom_call.1} parent=1 // pred_check
      _
    $region7: #{tpu_custom_call.1} parent=1 // pred_check_branch
      %27 = sbr.rel (0) target = $region9
    $region8: #{tpu_custom_call.1} parent=1 // pred_region
      %s28 = sadd.s32 0, 0
      %p29 = scmp.lt.s32.totalorder %s28, 0
      %s30 = scalar_select %p29, %s28, 0
      %s32 = ssub.s32 128, 128
      %33 = vsyncadd [#allocation7], %s32
      %s34 = smul.addr %s30, 128
      %s35 = scalar_lea.hbm %s1, %s34
      %s37 = sshll.u32 [#allocation6], 4
      %s38 = int_to_ptr.vmem [resolvable:$true] %s37
      %40 = dma.hbm_to_vmem [thread:$0]  %s35, 128, %s38, [#allocation7]
    $region9: #{tpu_custom_call.1} parent=1 // pred_fallthru
      _
    // Predicated region
    $region10: #{tpu_custom_call.1} parent=1 // pred_check
      _
    $region11: #{tpu_custom_call.1} parent=1 // pred_check_branch
      %42 = sbr.rel (0) target = $region13
    $region12: #{tpu_custom_call.1} parent=1 // pred_region
      _
    $region13: #{tpu_custom_call.1} parent=1 // pred_fallthru
      _
    // Predicated region
    $region14: #{tpu_custom_call.1} parent=1 // pred_check
      _
    $region15: #{tpu_custom_call.1} parent=1 // pred_check_branch
      %44 = sbr.rel (0) target = $region17
    $region16: #{tpu_custom_call.1} parent=1 // pred_region
      %45 = dma.done [#allocation4], 128
    $region17: #{tpu_custom_call.1} parent=1 // pred_fallthru
      _
    // Predicated region
    $region18: #{tpu_custom_call.1} parent=1 // pred_check
      _
    $region19: #{tpu_custom_call.1} parent=1 // pred_check_branch
      %47 = sbr.rel (0) target = $region21
    $region20: #{tpu_custom_call.1} parent=1 // pred_region
      %48 = dma.done [#allocation7], 128
    $region21: #{tpu_custom_call.1} parent=1 // pred_fallthru
      _
    %s49 = sadd.s32 0, 0
    %p50 = scmp.lt.s32.totalorder %s49, 0
    %s51 = scalar_select %p50, %s49, 0
    %s52 = sadd.s32 0, 0
    %p53 = scmp.lt.s32.totalorder %s52, 0
    %s54 = scalar_select %p53, %s52, 0
    %p55 = scmp.eq.s32.totalorder 0, 0
    // Predicated region
    $region22: #{tpu_custom_call.1} parent=1 // pred_check
      %p56 = pneg %p55
    $region23: #{tpu_custom_call.1} parent=1 // pred_check_branch
      %58 = sbr.rel (%p56) target = $region25
    $region24: #{tpu_custom_call.1} parent=1 // pred_region
      %59 = vst [vmem:[#allocation2] sm:$0xff] 0.0
    $region25: #{tpu_custom_call.1} parent=1 // pred_fallthru
      _
    %v60 = vld [vmem:[#allocation3] sm:$0xff]
    %v61 = vld [vmem:[#allocation6] sm:$0xff]
    %v62 = vmax.f32 %v60, -13.0
    %v63 = vmin.f32 %v62, 13.0
    %v64 = vmax.f32 %v63, 0.0
    %v65 = vmul.f32 %v63, %v61
    %v66 = vsub.f32 %v64, %v65
    %v67 = vand.u32 2147483647, %v63
    %v68 = vsub.f32 0.0, %v67
    %v69 = vmul.f32 %v68, 1.442695
    %v70 = vpow.pop %v69
    %v71 = vadd.f32 %v70, 1.0
    %v72 = vlog2.pop %v71
    %v73 = vmul.f32 %v72, 0.6931472
    %v74 = vmul.f32 -0.5, %v70
    %v75 = vadd.f32 %v74, 1.0
    %v76 = vmul.f32 %v75, %v70
    %v77 = vand.u32 2147483647, %v70
    %vm78 = vcmp.lt.f32.partialorder %v77, 0.0004427343
    %v79 = vsel %vm78, %v76, %v73
    %v80 = vadd.f32 %v66, %v79
    %v81 = vld [vmem:[#allocation2] sm:$0xff]
    %v82 = vadd.f32 %v81, %v80
    %83 = vst [vmem:[#allocation2] sm:$0xff] %v82
    // Predicated region
    $region26: #{tpu_custom_call.1} parent=1 // pred_check
      %p84 = pneg %p55
    $region27: #{tpu_custom_call.1} parent=1 // pred_check_branch
      %86 = sbr.rel (%p84) target = $region29
    $region28: #{tpu_custom_call.1} parent=1 // pred_region
      %v87 = vld [vmem:[#allocation2] sm:$0xff]
      %88 = vadd.xlane.f32.xlu0 %v87
      %v89 = vpop.xlane.xlu0 %88
      %v90 = vrot.slane %v89, 4
      %v91 = vadd.f32 %v89, %v90
      %v92 = vrot.slane %v91, 2
      %v93 = vadd.f32 %v91, %v92
      %v94 = vrot.slane %v93, 1
      %v95 = vadd.f32 %v93, %v94
      %s96 = vtos %v95
      %v97 = vld [vmem:[%s2] sm:$0x1]
      %vm98 = vcmask 1040384
      %v99 = vsel %vm98, %v97, 0.0
      %100 = vadd.xlane.f32.xlu0 %v99
      %v101 = vpop.xlane.xlu0 %100
      %v102 = vrot.slane %v101, 4
      %v103 = vadd.f32 %v101, %v102
      %v104 = vrot.slane %v103, 2
      %v105 = vadd.f32 %v103, %v104
      %v106 = vrot.slane %v105, 1
      %v107 = vadd.f32 %v105, %v106
      %s108 = vtos %v107
      %s109 = smul.f32 %s108, 0.0078125
      %s110 = smul.f32 %s96, 0.0009765625
      %s111 = smul.f32 %s110, %s109
      %v112 = vstv %s111
      %vm113 = vcmask 0
      %114 = vst.msk [vmem:[#allocation8] sm:$0x1] %vm113, %v112
    $region29: #{tpu_custom_call.1} parent=1 // pred_fallthru
      _
    // Predicated region
    $region30: #{tpu_custom_call.1} parent=1 // pred_check
      _
    $region31: #{tpu_custom_call.1} parent=1 // pred_check_branch
      %116 = sbr.rel (0) target = $region33
    $region32: #{tpu_custom_call.1} parent=1 // pred_region
      %s118 = ssub.s32 16, 16
      %119 = vsyncadd [#allocation5], %s118
      %s121 = sshll.u32 [#allocation8], 4
      %s122 = int_to_ptr.vmem [resolvable:$true] %s121
      %124 = dma.vmem_to_hbm [thread:$0]  %s122, 16, %s3, [#allocation5]
    $region33: #{tpu_custom_call.1} parent=1 // pred_fallthru
      _
    // Predicated region
    $region34: #{tpu_custom_call.1} parent=1 // pred_check
      _
    $region35: #{tpu_custom_call.1} parent=1 // pred_check_branch
      %126 = sbr.rel (0) target = $region37
    $region36: #{tpu_custom_call.1} parent=1 // pred_region
      %127 = dma.done [#allocation5], 16
    $region37: #{tpu_custom_call.1} parent=1 // pred_fallthru
      _
    %128 = vsyncpa [#allocation4], 1
    %129 = vsyncpa [#allocation7], 1
    %130 = vsyncpa [#allocation5], 1

</llo_original>
